<compile_context>
chip_gen: v7x
topology: tpu7x:2x2x1
jax: 0.10.0
libtpu: 0.0.40
codegen_flags: <defaults>
</compile_context>

<pallas_src>
from functools import partial

import jax
import jax.numpy as jnp
import numpy as np
from jax.experimental import pallas as pl
from jax.experimental.pallas import tpu as pltpu


def _softplus(x):
    # numerically stable softplus (matches F.softplus semantics)
    return jnp.maximum(x, 0.0) + jnp.log1p(jnp.exp(-jnp.abs(x)))


# ---------------------------------------------------------------------------
# Kernel: whole ensemble in one shot, 3 full-width matmuls, lane-packed layout.
# ---------------------------------------------------------------------------
def _prob_ensemble_kernel(
    x_ref,       # (B, Din)          raw input batch (normalization folded into w0p/b0p)
    w0_ref,      # (Din, E*H)        lane-packed layer-0 weights (norm folded in)
    w1_ref,      # (E*H, E*H)        block-diagonal layer-1 weights
    wl_ref,      # (E*H, 2*E*Dout)   block-diag last layer, columns = [means | logstds]
    c_ref,       # (8, CW)           consts slab: rows = b0p, b1p, blp, max_ls, min_ls
    eps_ref,     # (B, E*Dout)       gaussian noise, lane-packed
    samp_ref,    # (B, E*Dout)       output: samples
    mean_ref,    # (B, E*Dout)       output: mean
    logstd_ref,  # (B, E*Dout)       output: clamped logstd
):
    EH = w0_ref.shape[-1]
    EO = eps_ref.shape[-1]

    b0 = c_ref[0:1, :EH]            # (1, E*H)
    b1 = c_ref[1:2, :EH]            # (1, E*H)
    bl = c_ref[2:3, : 2 * EO]       # (1, 2*E*Dout)
    max_ls = c_ref[3:4, :EO]        # (1, E*Dout)   max_logstd tiled across members
    min_ls = c_ref[4:5, :EO]        # (1, E*Dout)   min_logstd tiled across members

    # layer 0: (B, Din) x (Din, E*H) — all members in one matmul, norm folded in
    h = jnp.tanh(jnp.dot(x_ref[...], w0_ref[...], preferred_element_type=jnp.float32) + b0)
    # layer 1: (B, E*H) x (E*H, E*H) block-diagonal — all members in one matmul
    h = jnp.tanh(jnp.dot(h, w1_ref[...], preferred_element_type=jnp.float32) + b1)
    # last layer: (B, E*H) x (E*H, 2*E*Dout) -> [all means | all logstds]
    out = jnp.dot(h, wl_ref[...], preferred_element_type=jnp.float32) + bl

    mean = out[:, :EO]
    logstd = out[:, EO:]

    # PETS-style soft clamping of logstd
    logstd = max_ls - _softplus(max_ls - logstd)
    logstd = min_ls + _softplus(logstd - min_ls)

    samp_ref[...] = mean + jnp.exp(logstd) * eps_ref[...]
    mean_ref[...] = mean
    logstd_ref[...] = logstd


# ---------------------------------------------------------------------------
# One-time parameter preparation (NOT on the per-step path).
# ---------------------------------------------------------------------------
def prepare_params(params):
    """Pack raw ProbabilisticEnsemble params into the lane-packed / block-diag kernel layout."""
    (mu, std, w0, b0, w1, b1, wl, bl, max_ls, min_ls) = params
    E, Din, H = w0.shape
    Dout2 = wl.shape[-1]
    Dout = Dout2 // 2
    EH = E * H
    EO = E * Dout
    CW = max(EH, 2 * EO)  # consts slab lane width

    # --- fold input normalization (x - mu) / std into layer 0 ---
    w0n = w0 / std[None, :, None]                                   # (E, Din, H)
    b0n = b0[:, 0, :] - jnp.einsum("i,eio->eo", mu / std, w0)       # (E, H)

    # --- lane-pack layer 0 (member-major columns) ---
    w0p = jnp.transpose(w0n, (1, 0, 2)).reshape(Din, EH)            # (Din, E*H)
    b0p = b0n.reshape(EH)

    # --- block-diagonal layer 1 (exact zeros off-diagonal) ---
    w1p = jnp.zeros((EH, EH), jnp.float32)
    for i in range(E):
        w1p = w1p.at[i * H:(i + 1) * H, i * H:(i + 1) * H].set(w1[i])
    b1p = b1[:, 0, :].reshape(EH)

    # --- block-diagonal last layer, columns permuted to [all means | all logstds] ---
    wlp = jnp.zeros((EH, 2 * EO), jnp.float32)
    blp = jnp.zeros((2 * EO,), jnp.float32)
    for i in range(E):
        rows = slice(i * H, (i + 1) * H)
        wlp = wlp.at[rows, i * Dout:(i + 1) * Dout].set(wl[i, :, :Dout])             # means
        wlp = wlp.at[rows, EO + i * Dout:EO + (i + 1) * Dout].set(wl[i, :, Dout:])   # logstds
        blp = blp.at[i * Dout:(i + 1) * Dout].set(bl[i, 0, :Dout])
        blp = blp.at[EO + i * Dout:EO + (i + 1) * Dout].set(bl[i, 0, Dout:])

    # --- fused small-constants slab ---
    consts = jnp.zeros((8, CW), jnp.float32)
    consts = consts.at[0, :EH].set(b0p)
    consts = consts.at[1, :EH].set(b1p)
    consts = consts.at[2, : 2 * EO].set(blp)
    consts = consts.at[3, :EO].set(jnp.tile(max_ls, E))
    consts = consts.at[4, :EO].set(jnp.tile(min_ls, E))

    packed = dict(w0p=w0p, w1p=w1p, wlp=wlp, consts=consts)
    return packed, E, Dout


# ---------------------------------------------------------------------------
# Per-step forward (jitted). eps arrives pre-packed as (B, E*Dout).
# ---------------------------------------------------------------------------
@partial(jax.jit, static_argnames=("ensemble_size", "out_dim"))
def probabilistic_ensemble_forward(x, eps_packed, w0p, w1p, wlp, consts, *,
                                   ensemble_size, out_dim):
    B = x.shape[0]
    E, Dout = ensemble_size, out_dim
    EO = E * Dout

    vmem = pl.BlockSpec(memory_space=pltpu.MemorySpace.VMEM)
    samp_p, mean_p, logstd_p = pl.pallas_call(
        _prob_ensemble_kernel,
        out_shape=(
            jax.ShapeDtypeStruct((B, EO), jnp.float32),
            jax.ShapeDtypeStruct((B, EO), jnp.float32),
            jax.ShapeDtypeStruct((B, EO), jnp.float32),
        ),
        in_specs=[vmem] * 6,
        out_specs=(vmem, vmem, vmem),
    )(x, w0p, w1p, wlp, consts, eps_packed)

    def unpack(a):  # (B, E*Dout) member-major lanes -> (E, B, Dout)
        return jnp.transpose(a.reshape(B, E, Dout), (1, 0, 2))

    return unpack(samp_p), unpack(mean_p), unpack(logstd_p)


# ---------------------------------------------------------------------------
# Pure-JAX reference of the original (unpacked) forward math.
# ---------------------------------------------------------------------------
@jax.jit
def _reference_forward(x, params, eps):
    (mu, std, w0, b0, w1, b1, wl, bl, max_ls, min_ls) = params
    E = w0.shape[0]
    Dout = wl.shape[-1] // 2
    h = (x - mu) / std
    h = jnp.broadcast_to(h[None], (E,) + h.shape)
    h = jnp.tanh(jnp.einsum("ebi,eio->ebo", h, w0) + b0)
    h = jnp.tanh(jnp.einsum("ebi,eio->ebo", h, w1) + b1)
    out = jnp.einsum("ebi,eio->ebo", h, wl) + bl
    mean, logstd = out[..., :Dout], out[..., Dout:]
    logstd = max_ls - _softplus(max_ls - logstd)
    logstd = min_ls + _softplus(logstd - min_ls)
    samples = mean + jnp.exp(logstd) * eps
    return samples, mean, logstd


def init_params(key, ensemble_size, obs_dim, action_dim, hidden):
    """Deterministic synthetic init mirroring ParallelizedLayer / ProbabilisticEnsemble."""
    Din = obs_dim + action_dim
    Dout2 = 2 * (obs_dim + 2)
    k0, k1, k2, k3, k4 = jax.random.split(key, 5)

    def layer(k, in_size, out_size):
        w_std = 1.0 / (2.0 * np.sqrt(in_size))
        w = jax.random.normal(k, (ensemble_size, in_size, out_size), jnp.float32)
        w = jnp.fmod(w, 2.0) * w_std                           # torch.fmod(randn, 2) * w_std
        b = jnp.zeros((ensemble_size, 1, out_size), jnp.float32)
        return w, b

    w0, b0 = layer(k0, Din, hidden)
    w1, b1 = layer(k1, hidden, hidden)
    wl, bl = layer(k2, hidden, Dout2)

    # Non-trivial input stats (as after fit_input_stats) so the folded normalization is
    # actually exercised by the correctness check. std is strictly positive.
    mu = 0.1 * jax.random.normal(k3, (Din,), jnp.float32)
    std = jnp.exp(0.2 * jax.random.normal(k4, (Din,), jnp.float32))
    max_ls = jnp.ones((obs_dim + 2,), jnp.float32)             # max_logstd
    min_ls = -5.0 * jnp.ones((obs_dim + 2,), jnp.float32)      # min_logstd
    return (mu, std, w0, b0, w1, b1, wl, bl, max_ls, min_ls)


if __name__ == "__main__":
    ensemble_size = 4
    obs_dim, action_dim = 6, 3
    hidden = 32
    batch = 8
    Dout = obs_dim + 2            # 8  -> E*Dout = 32, E*H = 128, 2*E*Dout = 64

    key = jax.random.PRNGKey(0)
    k_params, k_x, k_eps = jax.random.split(key, 3)

    params = init_params(k_params, ensemble_size, obs_dim, action_dim, hidden)
    packed, E, Dout = prepare_params(params)   # one-time prep (off the per-step path)

    x = jax.random.normal(k_x, (batch, obs_dim + action_dim), jnp.float32)
    eps_nat = jax.random.normal(k_eps, (ensemble_size, batch, Dout), jnp.float32)
    # lane-packed eps layout for the kernel: (B, E*Dout), member-major lanes
    eps_packed = jnp.transpose(eps_nat, (1, 0, 2)).reshape(batch, ensemble_size * Dout)

    samples, mean, logstd = probabilistic_ensemble_forward(
        x, eps_packed, packed["w0p"], packed["w1p"], packed["wlp"], packed["consts"],
        ensemble_size=ensemble_size, out_dim=Dout)
    jax.block_until_ready((samples, mean, logstd))

    assert samples.shape == (ensemble_size, batch, Dout)
    assert mean.shape == (ensemble_size, batch, Dout)
    assert logstd.shape == (ensemble_size, batch, Dout)

    # correctness vs. pure-JAX reference of the original (unfolded, unpacked) math
    ref_s, ref_m, ref_l = _reference_forward(x, params, eps_nat)
    np.testing.assert_allclose(np.asarray(samples), np.asarray(ref_s), rtol=1e-4, atol=1e-5)
    np.testing.assert_allclose(np.asarray(mean), np.asarray(ref_m), rtol=1e-4, atol=1e-5)
    np.testing.assert_allclose(np.asarray(logstd), np.asarray(ref_l), rtol=1e-4, atol=1e-5)

    print("KERNEL_OK")
</pallas_src>

<mosaic_0001>
module attributes {stable_mosaic.version = 11 : i64} {
  func.func @_prob_ensemble_kernel(%arg0: memref<8x9xf32, #tpu.memory_space<vmem>>, %arg1: memref<9x128xf32, #tpu.memory_space<vmem>>, %arg2: memref<128x128xf32, #tpu.memory_space<vmem>>, %arg3: memref<128x64xf32, #tpu.memory_space<vmem>>, %arg4: memref<8x128xf32, #tpu.memory_space<vmem>>, %arg5: memref<8x32xf32, #tpu.memory_space<vmem>>, %arg6: memref<8x32xf32, #tpu.memory_space<vmem>>, %arg7: memref<8x32xf32, #tpu.memory_space<vmem>>, %arg8: memref<8x32xf32, #tpu.memory_space<vmem>>) attributes {dimension_semantics = [], scalar_prefetch = 0 : i64, scratch_operands = 0 : i64, tpu.core_type = #tpu.core_type<tc>} {
    %c0 = arith.constant 0 : index
    %c0_0 = arith.constant 0 : index
    %0 = vector.load %arg4[%c0, %c0_0] : memref<8x128xf32, #tpu.memory_space<vmem>>, vector<1x128xf32>
    %c1 = arith.constant 1 : index
    %c0_1 = arith.constant 0 : index
    %1 = vector.load %arg4[%c1, %c0_1] : memref<8x128xf32, #tpu.memory_space<vmem>>, vector<1x128xf32>
    %c2 = arith.constant 2 : index
    %c0_2 = arith.constant 0 : index
    %2 = vector.load %arg4[%c2, %c0_2] : memref<8x128xf32, #tpu.memory_space<vmem>>, vector<1x64xf32>
    %c3 = arith.constant 3 : index
    %c0_3 = arith.constant 0 : index
    %3 = vector.load %arg4[%c3, %c0_3] : memref<8x128xf32, #tpu.memory_space<vmem>>, vector<1x32xf32>
    %c4 = arith.constant 4 : index
    %c0_4 = arith.constant 0 : index
    %4 = vector.load %arg4[%c4, %c0_4] : memref<8x128xf32, #tpu.memory_space<vmem>>, vector<1x32xf32>
    %c0_5 = arith.constant 0 : index
    %c0_6 = arith.constant 0 : index
    %5 = vector.load %arg0[%c0_5, %c0_6] : memref<8x9xf32, #tpu.memory_space<vmem>>, vector<8x9xf32>
    %c0_7 = arith.constant 0 : index
    %c0_8 = arith.constant 0 : index
    %6 = vector.load %arg1[%c0_7, %c0_8] : memref<9x128xf32, #tpu.memory_space<vmem>>, vector<9x128xf32>
    %cst = arith.constant dense<0.000000e+00> : vector<8x128xf32>
    %7 = tpu.matmul %5, %6, %cst {dimension_numbers = #tpu.dot_dimension_numbers<[1], [0], [0], [1], [0, 0, 1, 1], [], []>} : vector<8x9xf32>, vector<9x128xf32>, vector<8x128xf32> -> vector<8x128xf32>
    %8 = vector.broadcast %0 : vector<1x128xf32> to vector<8x128xf32>
    %9 = arith.addf %7, %8 : vector<8x128xf32>
    %10 = math.tanh %9 : vector<8x128xf32>
    %c0_9 = arith.constant 0 : index
    %c0_10 = arith.constant 0 : index
    %11 = vector.load %arg2[%c0_9, %c0_10] : memref<128x128xf32, #tpu.memory_space<vmem>>, vector<128x128xf32>
    %cst_11 = arith.constant dense<0.000000e+00> : vector<8x128xf32>
    %12 = tpu.matmul %10, %11, %cst_11 {dimension_numbers = #tpu.dot_dimension_numbers<[1], [0], [0], [1], [0, 0, 1, 1], [], []>} : vector<8x128xf32>, vector<128x128xf32>, vector<8x128xf32> -> vector<8x128xf32>
    %13 = vector.broadcast %1 : vector<1x128xf32> to vector<8x128xf32>
    %14 = arith.addf %12, %13 : vector<8x128xf32>
    %15 = math.tanh %14 : vector<8x128xf32>
    %c0_12 = arith.constant 0 : index
    %c0_13 = arith.constant 0 : index
    %16 = vector.load %arg3[%c0_12, %c0_13] : memref<128x64xf32, #tpu.memory_space<vmem>>, vector<128x64xf32>
    %cst_14 = arith.constant dense<0.000000e+00> : vector<8x64xf32>
    %17 = tpu.matmul %15, %16, %cst_14 {dimension_numbers = #tpu.dot_dimension_numbers<[1], [0], [0], [1], [0, 0, 1, 1], [], []>} : vector<8x128xf32>, vector<128x64xf32>, vector<8x64xf32> -> vector<8x64xf32>
    %18 = vector.broadcast %2 : vector<1x64xf32> to vector<8x64xf32>
    %19 = arith.addf %17, %18 : vector<8x64xf32>
    %20 = vector.extract_strided_slice %19 {offsets = [0, 0], sizes = [8, 32], strides = [1, 1]} : vector<8x64xf32> to vector<8x32xf32>
    %21 = vector.extract_strided_slice %19 {offsets = [0, 32], sizes = [8, 32], strides = [1, 1]} : vector<8x64xf32> to vector<8x32xf32>
    %22 = vector.broadcast %3 : vector<1x32xf32> to vector<8x32xf32>
    %23 = arith.subf %22, %21 : vector<8x32xf32>
    %cst_15 = arith.constant 0.000000e+00 : f32
    %24 = vector.broadcast %cst_15 : f32 to vector<8x32xf32>
    %25 = arith.maximumf %23, %24 : vector<8x32xf32>
    %26 = math.absf %23 : vector<8x32xf32>
    %cst_16 = arith.constant 0.000000e+00 : f32
    %27 = vector.broadcast %cst_16 : f32 to vector<8x32xf32>
    %28 = arith.subf %27, %26 : vector<8x32xf32>
    %29 = math.exp %28 : vector<8x32xf32>
    %30 = math.log1p %29 : vector<8x32xf32>
    %31 = arith.addf %25, %30 : vector<8x32xf32>
    %32 = vector.broadcast %3 : vector<1x32xf32> to vector<8x32xf32>
    %33 = arith.subf %32, %31 : vector<8x32xf32>
    %34 = vector.broadcast %4 : vector<1x32xf32> to vector<8x32xf32>
    %35 = arith.subf %33, %34 : vector<8x32xf32>
    %cst_17 = arith.constant 0.000000e+00 : f32
    %36 = vector.broadcast %cst_17 : f32 to vector<8x32xf32>
    %37 = arith.maximumf %35, %36 : vector<8x32xf32>
    %38 = math.absf %35 : vector<8x32xf32>
    %cst_18 = arith.constant 0.000000e+00 : f32
    %39 = vector.broadcast %cst_18 : f32 to vector<8x32xf32>
    %40 = arith.subf %39, %38 : vector<8x32xf32>
    %41 = math.exp %40 : vector<8x32xf32>
    %42 = math.log1p %41 : vector<8x32xf32>
    %43 = arith.addf %37, %42 : vector<8x32xf32>
    %44 = vector.broadcast %4 : vector<1x32xf32> to vector<8x32xf32>
    %45 = arith.addf %44, %43 : vector<8x32xf32>
    %46 = math.exp %45 : vector<8x32xf32>
    %c0_19 = arith.constant 0 : index
    %c0_20 = arith.constant 0 : index
    %47 = vector.load %arg5[%c0_19, %c0_20] : memref<8x32xf32, #tpu.memory_space<vmem>>, vector<8x32xf32>
    %48 = arith.mulf %46, %47 : vector<8x32xf32>
    %49 = arith.addf %20, %48 : vector<8x32xf32>
    %c0_21 = arith.constant 0 : index
    %c0_22 = arith.constant 0 : index
    %50 = vector.load %arg6[%c0_21, %c0_22] : memref<8x32xf32, #tpu.memory_space<vmem>>, vector<8x32xf32>
    tpu.vector_store %arg6[%c0_21, %c0_22], %49 {strides = array<i32>} : memref<8x32xf32, #tpu.memory_space<vmem>>, vector<8x32xf32>,
    %c0_23 = arith.constant 0 : index
    %c0_24 = arith.constant 0 : index
    %51 = vector.load %arg7[%c0_23, %c0_24] : memref<8x32xf32, #tpu.memory_space<vmem>>, vector<8x32xf32>
    tpu.vector_store %arg7[%c0_23, %c0_24], %20 {strides = array<i32>} : memref<8x32xf32, #tpu.memory_space<vmem>>, vector<8x32xf32>,
    %c0_25 = arith.constant 0 : index
    %c0_26 = arith.constant 0 : index
    %52 = vector.load %arg8[%c0_25, %c0_26] : memref<8x32xf32, #tpu.memory_space<vmem>>, vector<8x32xf32>
    tpu.vector_store %arg8[%c0_25, %c0_26], %45 {strides = array<i32>} : memref<8x32xf32, #tpu.memory_space<vmem>>, vector<8x32xf32>,
    return
  }
}

</mosaic_0001>

<llo_original>
// kernel: probabilistic_ensemble_forward.1
$region0: #{probabilistic_ensemble_forward.1}
  #allocation0 [shape = 'u32[]', space=smem, size = 0x4, offset = 0x4, fixed_abs, tag = 'smem constant byte address 0x4 - core index']
  #allocation1 [shape = 'u32[144,128]{1,0:T(1,128)}', space=vmem, size = 0x12000, scoped, tag = 'internal scratch']
  %s0 = inlined_call_operand.vmem [shape: f32[8,9], index: 0, kind: input, shape index: {}]
  %s1 = inlined_call_operand.vmem [shape: f32[9,128], index: 1, kind: input, shape index: {}]
  %s2 = inlined_call_operand.vmem [shape: f32[128,128], index: 2, kind: input, shape index: {}]
  %s3 = inlined_call_operand.vmem [shape: f32[128,64], index: 3, kind: input, shape index: {}]
  %s4 = inlined_call_operand.vmem [shape: f32[8,128], index: 4, kind: input, shape index: {}]
  %s5 = inlined_call_operand.vmem [shape: f32[8,32], index: 5, kind: input, shape index: {}]
  %s6 = inlined_call_operand.vmem [shape: f32[8,32], index: 6, kind: output, shape index: {0}]
  %s7 = inlined_call_operand.vmem [shape: f32[8,32], index: 7, kind: output, shape index: {1}]
  %s8 = inlined_call_operand.vmem [shape: f32[8,32], index: 8, kind: output, shape index: {2}]
  %9 = xla_tuple %s6, %s7, %s8
  %s10 = sld [smem:[#allocation0]]
  $region50: #{probabilistic_ensemble_forward.1} parent=0
    _
  %s12 = ssub.s32 1, %s10
  %s13 = scalar_select 0, %s12, %s10
  // Predicated region
  $region2: #{probabilistic_ensemble_forward.1} parent=0 // pred_check
    _
  $region3: #{probabilistic_ensemble_forward.1} parent=0 // pred_check_branch
    %15 = sbr.rel (0) target = $region5
  $region4: #{probabilistic_ensemble_forward.1} parent=0 // pred_region
    _
  $region5: #{probabilistic_ensemble_forward.1} parent=0 // pred_fallthru
    _
  // Predicated region
  $region6: #{probabilistic_ensemble_forward.1} parent=0 // pred_check
    _
  $region7: #{probabilistic_ensemble_forward.1} parent=0 // pred_check_branch
    %17 = sbr.rel (0) target = $region9
  $region8: #{probabilistic_ensemble_forward.1} parent=0 // pred_region
    _
  $region9: #{probabilistic_ensemble_forward.1} parent=0 // pred_fallthru
    _
  // Predicated region
  $region10: #{probabilistic_ensemble_forward.1} parent=0 // pred_check
    _
  $region11: #{probabilistic_ensemble_forward.1} parent=0 // pred_check_branch
    %19 = sbr.rel (0) target = $region13
  $region12: #{probabilistic_ensemble_forward.1} parent=0 // pred_region
    _
  $region13: #{probabilistic_ensemble_forward.1} parent=0 // pred_fallthru
    _
  // Predicated region
  $region14: #{probabilistic_ensemble_forward.1} parent=0 // pred_check
    _
  $region15: #{probabilistic_ensemble_forward.1} parent=0 // pred_check_branch
    %21 = sbr.rel (0) target = $region17
  $region16: #{probabilistic_ensemble_forward.1} parent=0 // pred_region
    _
  $region17: #{probabilistic_ensemble_forward.1} parent=0 // pred_fallthru
    _
  // Predicated region
  $region18: #{probabilistic_ensemble_forward.1} parent=0 // pred_check
    _
  $region19: #{probabilistic_ensemble_forward.1} parent=0 // pred_check_branch
    %23 = sbr.rel (0) target = $region21
  $region20: #{probabilistic_ensemble_forward.1} parent=0 // pred_region
    _
  $region21: #{probabilistic_ensemble_forward.1} parent=0 // pred_fallthru
    _
  // Predicated region
  $region22: #{probabilistic_ensemble_forward.1} parent=0 // pred_check
    _
  $region23: #{probabilistic_ensemble_forward.1} parent=0 // pred_check_branch
    %25 = sbr.rel (0) target = $region25
  $region24: #{probabilistic_ensemble_forward.1} parent=0 // pred_region
    _
  $region25: #{probabilistic_ensemble_forward.1} parent=0 // pred_fallthru
    _
  %v26 = vld [vmem:[%s4] sm:$0x1]
  %v27 = vld [vmem:[%s4 + $0x1] sm:$0x1]
  %v28 = vld [vmem:[%s4 + $0x2] sm:$0x1]
  %v29 = vld [vmem:[%s4 + $0x3] sm:$0x1]
  %v30 = vld [vmem:[%s4 + $0x4] sm:$0x1]
  %v31 = vld [vmem:[%s0] sm:$0xff]
  %v32 = vld [vmem:[%s1] sm:$0xff]
  %v33 = vld [vmem:[%s1 + $0x8] sm:$0x1]
  %v34 = vlaneseq
  %v35 = vshrl.u32 %v34, 7
  %v36 = vsub.s32 0, %v35
  %v37 = vrot.slane %v26, %v36
  %vm38 = vcmask 72704
  %v40 = vsel %vm38, %v31, 0
  %vm42 = vcmask 1040384
  %v44 = vsel %vm42, %v33, 0
  %46 = vmatprep.subr.mxu0 0.0
  %47 = vmatpush1.msra.mxu0 %v32
  %48 = vmatprep.subr.mxu0 0.0
  %49 = vmatpush1.msra.mxu0 %v44
  %50 = vmatprep.subr.mxu0 0.0
  %51 = vmatpush1.msra.mxu0 0.0
  %52 = vmatprep.subr.mxu0 0.0
  %53 = vmatpush1.msra.mxu0 0.0
  %54 = vmatprep.subr.mxu0 0.0
  %55 = vmatpush1.msra.mxu0 0.0
  %56 = vmatprep.subr.mxu0 0.0
  %57 = vmatpush1.msra.mxu0 0.0
  %58 = vmatprep.subr.mxu0 0.0
  %59 = vmatpush1.msra.mxu0 0.0
  %60 = vmatprep.subr.mxu0 0.0
  %61 = vmatpush1.msra.mxu0 0.0
  %62 = vmatprep.subr.mxu0 0.0
  %63 = vmatpush1.msra.mxu0 0.0
  %64 = vmatprep.subr.mxu0 0.0
  %65 = vmatpush1.msra.mxu0 0.0
  %66 = vmatprep.subr.mxu0 0.0
  %67 = vmatpush1.msra.mxu0 0.0
  %68 = vmatprep.subr.mxu0 0.0
  %69 = vmatpush1.msra.mxu0 0.0
  %70 = vmatprep.subr.mxu0 0.0
  %71 = vmatpush1.msra.mxu0 0.0
  %72 = vmatprep.subr.mxu0 0.0
  %73 = vmatpush1.msra.mxu0 0.0
  %74 = vmatprep.subr.mxu0 0.0
  %75 = vmatpush1.msra.mxu0 0.0
  %76 = vmatprep.subr.mxu0 0.0
  %77 = vmatpush1.msra.mxu0 0.0
  %78 = vmatprep.subr.mxu0 0.0
  %79 = vmatpush1.msra.mxu0 0.0
  %80 = vmatprep.subr.mxu0 0.0
  %81 = vmatpush1.msra.mxu0 0.0
  %82 = vmatprep.subr.mxu0 0.0
  %83 = vmatpush1.msra.mxu0 0.0
  %84 = vmatprep.subr.mxu0 0.0
  %85 = vmatpush1.msra.mxu0 0.0
  %86 = vmatprep.subr.mxu0 0.0
  %87 = vmatpush1.msra.mxu0 0.0
  %88 = vmatprep.subr.mxu0 0.0
  %89 = vmatpush1.msra.mxu0 0.0
  %90 = vmatprep.subr.mxu0 0.0
  %91 = vmatpush1.msra.mxu0 0.0
  %92 = vmatprep.subr.mxu0 0.0
  %93 = vmatpush1.msra.mxu0 0.0
  %94 = vmatprep.subr.mxu0 0.0
  %95 = vmatpush1.msra.mxu0 0.0
  %96 = vmatprep.subr.mxu0 0.0
  %97 = vmatpush1.msra.mxu0 0.0
  %98 = vmatprep.subr.mxu0 0.0
  %99 = vmatpush1.msra.mxu0 0.0
  %100 = vmatprep.subr.mxu0 0.0
  %101 = vmatpush1.msra.mxu0 0.0
  %102 = vmatprep.subr.mxu0 0.0
  %103 = vmatpush1.msra.mxu0 0.0
  %104 = vmatprep.subr.mxu0 0.0
  %105 = vmatpush1.msra.mxu0 0.0
  %106 = vmatprep.subr.mxu0 0.0
  %107 = vmatpush1.msra.mxu0 0.0
  %108 = vmatprep.subr.mxu0 0.0
  %109 = vmatpush1.msra.mxu0 0.0
  %110 = vmatprep.mubr.f32.mxu0 0.0
  %111 = vmatmul.mubr.f32.gmra.mrb[0].mxu0 %v40
  %v112 = vpop.f32.mrb[0].mxu0
  %v113 = vadd.f32 %v37, %v112
  %v114 = vpop.f32.mrb[0].mxu0
  %115 = vdwg.mxu0
  %v116 = vtanh.pop %v113
  %v117 = vld [vmem:[%s2] sm:$0xff]
  %v118 = vld [vmem:[%s2 + $0x8] sm:$0xff]
  %v119 = vld [vmem:[%s2 + $0x10] sm:$0xff]
  %v120 = vld [vmem:[%s2 + $0x18] sm:$0xff]
  %v121 = vld [vmem:[%s2 + $0x20] sm:$0xff]
  %v122 = vld [vmem:[%s2 + $0x28] sm:$0xff]
  %v123 = vld [vmem:[%s2 + $0x30] sm:$0xff]
  %v124 = vld [vmem:[%s2 + $0x38] sm:$0xff]
  %v125 = vld [vmem:[%s2 + $0x40] sm:$0xff]
  %v126 = vld [vmem:[%s2 + $0x48] sm:$0xff]
  %v127 = vld [vmem:[%s2 + $0x50] sm:$0xff]
  %v128 = vld [vmem:[%s2 + $0x58] sm:$0xff]
  %v129 = vld [vmem:[%s2 + $0x60] sm:$0xff]
  %v130 = vld [vmem:[%s2 + $0x68] sm:$0xff]
  %v131 = vld [vmem:[%s2 + $0x70] sm:$0xff]
  %v132 = vld [vmem:[%s2 + $0x78] sm:$0xff]
  %v133 = vlaneseq
  %v134 = vshrl.u32 %v133, 7
  %v135 = vsub.s32 0, %v134
  %v136 = vrot.slane %v27, %v135
  %137 = vmatprep.subr.mxu0 0.0
  %138 = vmatpush1.msra.mxu0 %v117
  %139 = vmatprep.subr.mxu0 0.0
  %140 = vmatpush1.msra.mxu0 %v118
  %141 = vmatprep.subr.mxu0 0.0
  %142 = vmatpush1.msra.mxu0 %v119
  %143 = vmatprep.subr.mxu0 0.0
  %144 = vmatpush1.msra.mxu0 %v120
  %145 = vmatprep.subr.mxu0 0.0
  %146 = vmatpush1.msra.mxu0 %v121
  %147 = vmatprep.subr.mxu0 0.0
  %148 = vmatpush1.msra.mxu0 %v122
  %149 = vmatprep.subr.mxu0 0.0
  %150 = vmatpush1.msra.mxu0 %v123
  %151 = vmatprep.subr.mxu0 0.0
  %152 = vmatpush1.msra.mxu0 %v124
  %153 = vmatprep.subr.mxu0 0.0
  %154 = vmatpush1.msra.mxu0 %v125
  %155 = vmatprep.subr.mxu0 0.0
  %156 = vmatpush1.msra.mxu0 %v126
  %157 = vmatprep.subr.mxu0 0.0
  %158 = vmatpush1.msra.mxu0 %v127
  %159 = vmatprep.subr.mxu0 0.0
  %160 = vmatpush1.msra.mxu0 %v128
  %161 = vmatprep.subr.mxu0 0.0
  %162 = vmatpush1.msra.mxu0 %v129
  %163 = vmatprep.subr.mxu0 0.0
  %164 = vmatpush1.msra.mxu0 %v130
  %165 = vmatprep.subr.mxu0 0.0
  %166 = vmatpush1.msra.mxu0 %v131
  %167 = vmatprep.subr.mxu0 0.0
  %168 = vmatpush1.msra.mxu0 %v132
  %169 = vmatprep.subr.mxu0 0.0
  %170 = vmatpush1.msra.mxu0 0.0
  %171 = vmatprep.subr.mxu0 0.0
  %172 = vmatpush1.msra.mxu0 0.0
  %173 = vmatprep.subr.mxu0 0.0
  %174 = vmatpush1.msra.mxu0 0.0
  %175 = vmatprep.subr.mxu0 0.0
  %176 = vmatpush1.msra.mxu0 0.0
  %177 = vmatprep.subr.mxu0 0.0
  %178 = vmatpush1.msra.mxu0 0.0
  %179 = vmatprep.subr.mxu0 0.0
  %180 = vmatpush1.msra.mxu0 0.0
  %181 = vmatprep.subr.mxu0 0.0
  %182 = vmatpush1.msra.mxu0 0.0
  %183 = vmatprep.subr.mxu0 0.0
  %184 = vmatpush1.msra.mxu0 0.0
  %185 = vmatprep.subr.mxu0 0.0
  %186 = vmatpush1.msra.mxu0 0.0
  %187 = vmatprep.subr.mxu0 0.0
  %188 = vmatpush1.msra.mxu0 0.0
  %189 = vmatprep.subr.mxu0 0.0
  %190 = vmatpush1.msra.mxu0 0.0
  %191 = vmatprep.subr.mxu0 0.0
  %192 = vmatpush1.msra.mxu0 0.0
  %193 = vmatprep.subr.mxu0 0.0
  %194 = vmatpush1.msra.mxu0 0.0
  %195 = vmatprep.subr.mxu0 0.0
  %196 = vmatpush1.msra.mxu0 0.0
  %197 = vmatprep.subr.mxu0 0.0
  %198 = vmatpush1.msra.mxu0 0.0
  %199 = vmatprep.subr.mxu0 0.0
  %200 = vmatpush1.msra.mxu0 0.0
  %201 = vmatprep.mubr.f32.mxu0 0.0
  %202 = vmatmul.mubr.f32.gmra.mrb[0].mxu0 %v116
  %v203 = vpop.f32.mrb[0].mxu0
  %v204 = vadd.f32 %v136, %v203
  %v205 = vpop.f32.mrb[0].mxu0
  %206 = vdwg.mxu0
  %v207 = vtanh.pop %v204
  %v208 = vld [vmem:[%s3] sm:$0xff]
  %v209 = vld [vmem:[%s3 + $0x8] sm:$0xff]
  %v210 = vld [vmem:[%s3 + $0x10] sm:$0xff]
  %v211 = vld [vmem:[%s3 + $0x18] sm:$0xff]
  %v212 = vld [vmem:[%s3 + $0x20] sm:$0xff]
  %v213 = vld [vmem:[%s3 + $0x28] sm:$0xff]
  %v214 = vld [vmem:[%s3 + $0x30] sm:$0xff]
  %v215 = vld [vmem:[%s3 + $0x38] sm:$0xff]
  %v216 = vld [vmem:[%s3 + $0x40] sm:$0xff]
  %v217 = vld [vmem:[%s3 + $0x48] sm:$0xff]
  %v218 = vld [vmem:[%s3 + $0x50] sm:$0xff]
  %v219 = vld [vmem:[%s3 + $0x58] sm:$0xff]
  %v220 = vld [vmem:[%s3 + $0x60] sm:$0xff]
  %v221 = vld [vmem:[%s3 + $0x68] sm:$0xff]
  %v222 = vld [vmem:[%s3 + $0x70] sm:$0xff]
  %v223 = vld [vmem:[%s3 + $0x78] sm:$0xff]
  %v224 = vlaneseq
  %v225 = vshrl.u32 %v224, 7
  %v226 = vsub.s32 0, %v225
  %v227 = vrot.slane %v28, %v226
  %228 = vmatprep.subr.mxu0 0.0
  %229 = vmatpush1.msra.mxu0 %v208
  %230 = vmatprep.subr.mxu0 0.0
  %231 = vmatpush1.msra.mxu0 %v209
  %232 = vmatprep.subr.mxu0 0.0
  %233 = vmatpush1.msra.mxu0 %v210
  %234 = vmatprep.subr.mxu0 0.0
  %235 = vmatpush1.msra.mxu0 %v211
  %236 = vmatprep.subr.mxu0 0.0
  %237 = vmatpush1.msra.mxu0 %v212
  %238 = vmatprep.subr.mxu0 0.0
  %239 = vmatpush1.msra.mxu0 %v213
  %240 = vmatprep.subr.mxu0 0.0
  %241 = vmatpush1.msra.mxu0 %v214
  %242 = vmatprep.subr.mxu0 0.0
  %243 = vmatpush1.msra.mxu0 %v215
  %244 = vmatprep.subr.mxu0 0.0
  %245 = vmatpush1.msra.mxu0 %v216
  %246 = vmatprep.subr.mxu0 0.0
  %247 = vmatpush1.msra.mxu0 %v217
  %248 = vmatprep.subr.mxu0 0.0
  %249 = vmatpush1.msra.mxu0 %v218
  %250 = vmatprep.subr.mxu0 0.0
  %251 = vmatpush1.msra.mxu0 %v219
  %252 = vmatprep.subr.mxu0 0.0
  %253 = vmatpush1.msra.mxu0 %v220
  %254 = vmatprep.subr.mxu0 0.0
  %255 = vmatpush1.msra.mxu0 %v221
  %256 = vmatprep.subr.mxu0 0.0
  %257 = vmatpush1.msra.mxu0 %v222
  %258 = vmatprep.subr.mxu0 0.0
  %259 = vmatpush1.msra.mxu0 %v223
  %260 = vmatprep.subr.mxu0 0.0
  %261 = vmatpush1.msra.mxu0 0.0
  %262 = vmatprep.subr.mxu0 0.0
  %263 = vmatpush1.msra.mxu0 0.0
  %264 = vmatprep.subr.mxu0 0.0
  %265 = vmatpush1.msra.mxu0 0.0
  %266 = vmatprep.subr.mxu0 0.0
  %267 = vmatpush1.msra.mxu0 0.0
  %268 = vmatprep.subr.mxu0 0.0
  %269 = vmatpush1.msra.mxu0 0.0
  %270 = vmatprep.subr.mxu0 0.0
  %271 = vmatpush1.msra.mxu0 0.0
  %272 = vmatprep.subr.mxu0 0.0
  %273 = vmatpush1.msra.mxu0 0.0
  %274 = vmatprep.subr.mxu0 0.0
  %275 = vmatpush1.msra.mxu0 0.0
  %276 = vmatprep.subr.mxu0 0.0
  %277 = vmatpush1.msra.mxu0 0.0
  %278 = vmatprep.subr.mxu0 0.0
  %279 = vmatpush1.msra.mxu0 0.0
  %280 = vmatprep.subr.mxu0 0.0
  %281 = vmatpush1.msra.mxu0 0.0
  %282 = vmatprep.subr.mxu0 0.0
  %283 = vmatpush1.msra.mxu0 0.0
  %284 = vmatprep.subr.mxu0 0.0
  %285 = vmatpush1.msra.mxu0 0.0
  %286 = vmatprep.subr.mxu0 0.0
  %287 = vmatpush1.msra.mxu0 0.0
  %288 = vmatprep.subr.mxu0 0.0
  %289 = vmatpush1.msra.mxu0 0.0
  %290 = vmatprep.subr.mxu0 0.0
  %291 = vmatpush1.msra.mxu0 0.0
  %292 = vmatprep.mubr.f32.mxu0 0.0
  %293 = vmatmul.mubr.f32.gmra.mrb[0].mxu0 %v207
  %v294 = vpop.f32.mrb[0].mxu0
  %v295 = vadd.f32 %v227, %v294
  %v296 = vpop.f32.mrb[0].mxu0
  %297 = vdwg.mxu0
  %v298 = vlaneseq
  %v299 = vshrl.u32 %v298, 7
  %v300 = vsub.s32 0, %v299
  %v301 = vrot.slane %v29, %v300
  %303 = vrot.lane.b32.xlu0 %v295, 96
  %v304 = vpop.permute.xlu0 %303
  %v306 = vsub.f32 %v301, %v304
  %v307 = vmax.f32 %v306, 0.0
  %v308 = vand.u32 2147483647, %v306
  %v309 = vsub.f32 0.0, %v308
  %v310 = vmul.f32 %v309, 1.442695
  %v311 = vpow.pop %v310
  %v312 = vadd.f32 %v311, 1.0
  %v313 = vlog2.pop %v312
  %v314 = vmul.f32 %v313, 0.6931472
  %v315 = vmul.f32 -0.5, %v311
  %v316 = vadd.f32 %v315, 1.0
  %v317 = vmul.f32 %v316, %v311
  %v318 = vand.u32 2147483647, %v311
  %vm319 = vcmp.lt.f32.partialorder %v318, 0.0004427343
  %v320 = vsel %vm319, %v317, %v314
  %v321 = vadd.f32 %v307, %v320
  %v322 = vsub.f32 %v301, %v321
  %v323 = vlaneseq
  %v324 = vshrl.u32 %v323, 7
  %v325 = vsub.s32 0, %v324
  %v326 = vrot.slane %v30, %v325
  %v327 = vsub.f32 %v322, %v326
  %v328 = vmax.f32 %v327, 0.0
  %v329 = vand.u32 2147483647, %v327
  %v330 = vsub.f32 0.0, %v329
  %v331 = vmul.f32 %v330, 1.442695
  %v332 = vpow.pop %v331
  %v333 = vadd.f32 %v332, 1.0
  %v334 = vlog2.pop %v333
  %v335 = vmul.f32 %v334, 0.6931472
  %v336 = vmul.f32 -0.5, %v332
  %v337 = vadd.f32 %v336, 1.0
  %v338 = vmul.f32 %v337, %v332
  %v339 = vand.u32 2147483647, %v332
  %vm340 = vcmp.lt.f32.partialorder %v339, 0.0004427343
  %v341 = vsel %vm340, %v338, %v335
  %v342 = vadd.f32 %v328, %v341
  %v343 = vadd.f32 %v326, %v342
  %v344 = vmul.f32 %v343, 1.442695
  %v345 = vpow.pop %v344
  %v346 = vld [vmem:[%s5] sm:$0xff]
  %v347 = vmul.f32 %v345, %v346
  %v348 = vadd.f32 %v295, %v347
  %vm349 = vcmask 261120
  %350 = vst.msk [vmem:[%s6] sm:$0xff] %vm349, %v348
  %351 = vst.msk [vmem:[%s7] sm:$0xff] %vm349, %v295
  %352 = vst.msk [vmem:[%s8] sm:$0xff] %vm349, %v343
  // Predicated region
  $region26: #{probabilistic_ensemble_forward.1} parent=0 // pred_check
    _
  $region27: #{probabilistic_ensemble_forward.1} parent=0 // pred_check_branch
    %354 = sbr.rel (0) target = $region29
  $region28: #{probabilistic_ensemble_forward.1} parent=0 // pred_region
    _
  $region29: #{probabilistic_ensemble_forward.1} parent=0 // pred_fallthru
    _
  // Predicated region
  $region30: #{probabilistic_ensemble_forward.1} parent=0 // pred_check
    _
  $region31: #{probabilistic_ensemble_forward.1} parent=0 // pred_check_branch
    %356 = sbr.rel (0) target = $region33
  $region32: #{probabilistic_ensemble_forward.1} parent=0 // pred_region
    _
  $region33: #{probabilistic_ensemble_forward.1} parent=0 // pred_fallthru
    _
  // Predicated region
  $region34: #{probabilistic_ensemble_forward.1} parent=0 // pred_check
    _
  $region35: #{probabilistic_ensemble_forward.1} parent=0 // pred_check_branch
    %358 = sbr.rel (0) target = $region37
  $region36: #{probabilistic_ensemble_forward.1} parent=0 // pred_region
    _
  $region37: #{probabilistic_ensemble_forward.1} parent=0 // pred_fallthru
    _
  // Predicated region
  $region38: #{probabilistic_ensemble_forward.1} parent=0 // pred_check
    _
  $region39: #{probabilistic_ensemble_forward.1} parent=0 // pred_check_branch
    %360 = sbr.rel (0) target = $region41
  $region40: #{probabilistic_ensemble_forward.1} parent=0 // pred_region
    _
  $region41: #{probabilistic_ensemble_forward.1} parent=0 // pred_fallthru
    _
  // Predicated region
  $region42: #{probabilistic_ensemble_forward.1} parent=0 // pred_check
    _
  $region43: #{probabilistic_ensemble_forward.1} parent=0 // pred_check_branch
    %362 = sbr.rel (0) target = $region45
  $region44: #{probabilistic_ensemble_forward.1} parent=0 // pred_region
    _
  $region45: #{probabilistic_ensemble_forward.1} parent=0 // pred_fallthru
    _
  // Predicated region
  $region46: #{probabilistic_ensemble_forward.1} parent=0 // pred_check
    _
  $region47: #{probabilistic_ensemble_forward.1} parent=0 // pred_check_branch
    %364 = sbr.rel (0) target = $region49
  $region48: #{probabilistic_ensemble_forward.1} parent=0 // pred_region
    _
  $region49: #{probabilistic_ensemble_forward.1} parent=0 // pred_fallthru
    _

</llo_original>
